<compile_context>
chip_gen: v7x
topology: tpu7x:2x2x1
jax: 0.10.0
libtpu: 0.0.40
codegen_flags: <defaults>
</compile_context>

<pallas_src>
import functools

import jax
import jax.numpy as jnp
from jax.experimental import pallas as pl
from jax.experimental.pallas import tpu as pltpu

LANE = 128


def _round_up(n: int, m: int) -> int:
    return (n + m - 1) // m * m


def _sublane_pack(dtype) -> int:
    # Rows per packed vreg tile: 8 for f32, 16 for bf16, 32 for int8/fp8.
    return max(8, 32 // jnp.dtype(dtype).itemsize)


def _vmem_capacity_bytes() -> int:
    try:
        return int(pltpu.get_tpu_info().vmem_capacity_bytes)
    except Exception:
        return 64 << 20  # conservative fallback (v7x per-TC VMEM)


def res_kernel(x_ref, w1_ref, b1_ref, w2_ref, b2_ref, o_ref, *, mxu_dtype):
    """One batch tile: Linear1 -> tanh -> Linear2 -> leaky_relu -> + residual."""
    x = x_ref[...]
    xa = x if mxu_dtype is None else x.astype(mxu_dtype)
    w1 = w1_ref[...] if mxu_dtype is None else w1_ref[...].astype(mxu_dtype)

    # Linear1 + Tanh (f32 accumulate / f32 elementwise -> safe on v5e).
    h = jnp.dot(xa, w1, preferred_element_type=jnp.float32)
    h = h + b1_ref[...].astype(jnp.float32)
    # NOTE: for very small feature widths the single EUP is the binding slot
    # on v6e/v7x; a bf16 tanh would double its throughput there, but f32 is
    # kept for accuracy and v5e compatibility.
    h = jnp.tanh(h)

    # Linear2 + LeakyReLU (PyTorch default negative_slope = 0.01).
    w2 = w2_ref[...] if mxu_dtype is None else w2_ref[...].astype(mxu_dtype)
    y = jnp.dot(h.astype(w2.dtype), w2, preferred_element_type=jnp.float32)
    y = y + b2_ref[...].astype(jnp.float32)
    y = jnp.where(y > 0, y, 0.01 * y)

    # Residual: x @ eye(input, output) just zero-extends / truncates x, so add
    # x back at store time with lane-aligned slices (in_p/out_p are multiples
    # of 128 -> unmasked vst).  Padding columns are sliced away by the wrapper.
    in_p = x_ref.shape[1]
    out_p = o_ref.shape[1]
    if in_p == out_p:
        o_ref[...] = (y + x_ref[...].astype(jnp.float32)).astype(o_ref.dtype)
    else:
        c = min(in_p, out_p)
        o_ref[:, :c] = (y[:, :c] + x_ref[:, :c].astype(jnp.float32)
                        ).astype(o_ref.dtype)
        if out_p > in_p:
            o_ref[:, c:] = y[:, c:].astype(o_ref.dtype)


class ResPallas:
    """Pallas port of Res(input_size, output_size).

    Weights are stored already transposed vs. torch.nn.Linear:
      w1: (input_size, output_size), b1: (output_size,)
      w2: (output_size, output_size), b2: (output_size,)
    They are lane-padded once here so each forward only (maybe) pads x.
    """

    def __init__(self, w1, b1, w2, b2, *, mxu_dtype=None, x_buffers=2):
        self.input_size, self.output_size = int(w1.shape[0]), int(w1.shape[1])
        assert b1.shape == (self.output_size,)
        assert w2.shape == (self.output_size, self.output_size)
        assert b2.shape == (self.output_size,)
        self.in_p = _round_up(self.input_size, LANE)
        self.out_p = _round_up(self.output_size, LANE)
        self.mxu_dtype = mxu_dtype
        self.x_buffers = int(x_buffers)        # 3 can hide exposed x DMA on v5e
        self.w_itemsize = jnp.dtype(w1.dtype).itemsize

        self.w1 = self._pad2(w1, self.in_p, self.out_p)
        self.b1 = self._pad2(b1.reshape(1, -1), 1, self.out_p)
        self.w2 = self._pad2(w2, self.out_p, self.out_p)
        self.b2 = self._pad2(b2.reshape(1, -1), 1, self.out_p)

    @staticmethod
    def _pad2(a, rows, cols):
        if a.shape == (rows, cols):
            return a
        return jnp.zeros((rows, cols), a.dtype).at[:a.shape[0], :a.shape[1]].set(a)

    def __call__(self, x):
        B, in_features = x.shape
        assert in_features == self.input_size
        dtype = x.dtype
        itemsize = jnp.dtype(dtype).itemsize
        pack = _sublane_pack(dtype)
        in_p, out_p = self.in_p, self.out_p

        # ---- VMEM budget -> batch tile ------------------------------------
        budget = int(_vmem_capacity_bytes() * 0.85)  # Mosaic-scratch headroom
        weight_bytes = (in_p * out_p + out_p * out_p + 2 * out_p) * self.w_itemsize
        stream_row_bytes = (max(self.x_buffers, 2) * in_p + 2 * out_p) * itemsize
        avail = budget - weight_bytes - (4 << 20)
        # Note: for output widths so large that the resident w2 alone blows the
        # budget, this kernel would need a second grid axis tiling w2's output
        # columns (with tanh(x@w1+b1) cached in scratch); not needed here.
        tb = int(min(max(pack, avail // max(stream_row_bytes, 1)), 1024))
        tb = max(pack, (tb // pack) * pack)
        # Keep >= 2 batch tiles when splittable so "parallel" feeds both v7x TCs.
        if B > pack and tb >= B:
            tb = _round_up(-(-B // 2), pack)
        tb = max(pack, min(tb, _round_up(B, pack)))
        b_p = _round_up(B, tb)

        if x.shape == (b_p, in_p):
            xp = x                               # already aligned: no copy
        else:
            xp = jnp.zeros((b_p, in_p), dtype).at[:B, :in_features].set(x)

        cost = pl.CostEstimate(
            flops=2 * b_p * in_p * out_p + 2 * b_p * out_p * out_p,
            transcendentals=b_p * out_p,
            bytes_accessed=(b_p * (in_p + out_p) * itemsize + weight_bytes),
        )

        kernel = functools.partial(res_kernel, mxu_dtype=self.mxu_dtype)

        def call(use_hints: bool):
            def spec(shape, index_map, buffers=None):
                if use_hints and buffers is not None:
                    return pl.BlockSpec(shape, index_map,
                                        pipeline_mode=pl.Buffered(buffers))
                return pl.BlockSpec(shape, index_map)

            x_buf = self.x_buffers if self.x_buffers != 2 else None
            return pl.pallas_call(
                kernel,
                out_shape=jax.ShapeDtypeStruct((b_p, out_p), dtype),
                grid=(b_p // tb,),
                in_specs=[
                    spec((tb, in_p), lambda i: (i, 0), x_buf),      # x tile
                    spec((in_p, out_p), lambda i: (0, 0), 1),       # w1 resident
                    spec((1, out_p), lambda i: (0, 0), 1),          # b1 resident
                    spec((out_p, out_p), lambda i: (0, 0), 1),      # w2 resident
                    spec((1, out_p), lambda i: (0, 0), 1),          # b2 resident
                ],
                out_specs=pl.BlockSpec((tb, out_p), lambda i: (i, 0)),
                compiler_params=pltpu.CompilerParams(
                    dimension_semantics=("parallel",),
                    vmem_limit_bytes=budget,
                ),
                cost_estimate=cost,
            )(xp, self.w1, self.b1, self.w2, self.b2)

        try:
            out_padded = call(use_hints=True)
        except Exception:
            # Fallback for Pallas builds without pipeline_mode buffer hints.
            out_padded = call(use_hints=False)

        if (B, self.output_size) == (b_p, out_p):
            return out_padded
        return out_padded[:B, :self.output_size]


def init_params(key, input_size, output_size, dtype=jnp.float32):
    """Deterministic init mimicking PyTorch's default U(-1/sqrt(fan_in), 1/sqrt(fan_in))."""
    k1, k2, k3, k4 = jax.random.split(key, 4)
    s1 = 1.0 / (input_size ** 0.5)
    s2 = 1.0 / (output_size ** 0.5)
    w1 = jax.random.uniform(k1, (input_size, output_size), dtype, -s1, s1)
    b1 = jax.random.uniform(k2, (output_size,), dtype, -s1, s1)
    w2 = jax.random.uniform(k3, (output_size, output_size), dtype, -s2, s2)
    b2 = jax.random.uniform(k4, (output_size,), dtype, -s2, s2)
    return w1, b1, w2, b2


def res_reference(x, w1, b1, w2, b2):
    """Pure-JAX reference (matches the PyTorch module)."""
    h = jnp.tanh(x @ w1 + b1)
    y = h @ w2 + b2
    y = jnp.where(y > 0, y, 0.01 * y)
    eye = jnp.eye(x.shape[1], w1.shape[1], dtype=x.dtype)
    return y + x @ eye


if __name__ == "__main__":
    key = jax.random.PRNGKey(0)
    kx1, kp1, kx2, kp2, kx3, kp3 = jax.random.split(key, 6)

    # Config 1: input < output (residual zero-extends x), single batch tile.
    batch, input_size, output_size = 8, 32, 48
    x = jax.random.normal(kx1, (batch, input_size), jnp.float32)
    w1, b1, w2, b2 = init_params(kp1, input_size, output_size)
    ref = res_reference(x, w1, b1, w2, b2)

    model = ResPallas(w1, b1, w2, b2)                 # f32 storage, f32 MXU
    out = jax.block_until_ready(model(x))
    assert out.shape == (batch, output_size)
    assert jnp.allclose(out, ref, atol=1e-4, rtol=1e-4), "f32 path mismatch"

    # bf16 storage path (recommended on v6e/v7x): MXU inputs bf16,
    # accumulation + elementwise math stay f32 inside the kernel.
    cast = lambda a: a.astype(jnp.bfloat16)
    model_bf16 = ResPallas(cast(w1), cast(b1), cast(w2), cast(b2))
    out_bf16 = jax.block_until_ready(model_bf16(cast(x))).astype(jnp.float32)
    assert out_bf16.shape == (batch, output_size)
    assert bool(jnp.all(jnp.isfinite(out_bf16)))
    assert jnp.allclose(out_bf16, ref, atol=0.25, rtol=0.25), "bf16 path mismatch"

    # f32 storage with bf16 MXU operands (~3x MXU throughput, f32 accumulate).
    model_fast = ResPallas(w1, b1, w2, b2, mxu_dtype=jnp.bfloat16)
    out_fast = jax.block_until_ready(model_fast(x))
    assert jnp.allclose(out_fast, ref, atol=0.25, rtol=0.25), "bf16-MXU path mismatch"

    # Config 2: padded widths differ (in_p < out_p -> two-store residual path),
    # multiple batch tiles (2-TC split logic exercised).
    b2_, in2, out2 = 64, 48, 160
    x2 = jax.random.normal(kx2, (b2_, in2), jnp.float32)
    p2 = init_params(kp2, in2, out2)
    o2 = jax.block_until_ready(ResPallas(*p2)(x2))
    assert o2.shape == (b2_, out2)
    assert jnp.allclose(o2, res_reference(x2, *p2), atol=1e-4, rtol=1e-4), "cfg2 mismatch"

    # Config 3: input wider than output (residual truncates x), batch not a
    # multiple of the tile (padding path exercised).
    b3_, in3, out3 = 24, 200, 96
    x3 = jax.random.normal(kx3, (b3_, in3), jnp.float32)
    p3 = init_params(kp3, in3, out3)
    o3 = jax.block_until_ready(ResPallas(*p3)(x3))
    assert o3.shape == (b3_, out3)
    assert jnp.allclose(o3, res_reference(x3, *p3), atol=1e-4, rtol=1e-4), "cfg3 mismatch"

    print("KERNEL_OK")
</pallas_src>

<mosaic_0001>
module attributes {stable_mosaic.version = 11 : i64} {
  func.func @res_kernel(%arg0: i32, %arg1: memref<8x128xf32, #tpu.memory_space<vmem>>, %arg2: memref<128x128xf32, #tpu.memory_space<vmem>>, %arg3: memref<1x128xf32, #tpu.memory_space<vmem>>, %arg4: memref<128x128xf32, #tpu.memory_space<vmem>>, %arg5: memref<1x128xf32, #tpu.memory_space<vmem>>, %arg6: memref<8x128xf32, #tpu.memory_space<vmem>>) attributes {dimension_semantics = [#tpu.dimension_semantics<parallel>], iteration_bounds = array<i64: 1>, scalar_prefetch = 0 : i64, scratch_operands = 0 : i64, tpu.core_type = #tpu.core_type<tc>, window_params = [{transform_indices = @transform_0, window_bounds = array<i64: 8, 128>}, {pipeline_mode = #tpu.pipeline_mode<synchronous>, transform_indices = @transform_1, window_bounds = array<i64: 128, 128>}, {pipeline_mode = #tpu.pipeline_mode<synchronous>, transform_indices = @transform_2, window_bounds = array<i64: 1, 128>}, {pipeline_mode = #tpu.pipeline_mode<synchronous>, transform_indices = @transform_3, window_bounds = array<i64: 128, 128>}, {pipeline_mode = #tpu.pipeline_mode<synchronous>, transform_indices = @transform_4, window_bounds = array<i64: 1, 128>}, {transform_indices = @transform_5, window_bounds = array<i64: 8, 128>}]} {
    %c0 = arith.constant 0 : index
    %c0_0 = arith.constant 0 : index
    %0 = vector.load %arg1[%c0, %c0_0] : memref<8x128xf32, #tpu.memory_space<vmem>>, vector<8x128xf32>
    %c0_1 = arith.constant 0 : index
    %c0_2 = arith.constant 0 : index
    %1 = vector.load %arg2[%c0_1, %c0_2] : memref<128x128xf32, #tpu.memory_space<vmem>>, vector<128x128xf32>
    %cst = arith.constant dense<0.000000e+00> : vector<8x128xf32>
    %2 = tpu.matmul %0, %1, %cst {dimension_numbers = #tpu.dot_dimension_numbers<[1], [0], [0], [1], [0, 0, 1, 1], [], []>} : vector<8x128xf32>, vector<128x128xf32>, vector<8x128xf32> -> vector<8x128xf32>
    %c0_3 = arith.constant 0 : index
    %c0_4 = arith.constant 0 : index
    %3 = vector.load %arg3[%c0_3, %c0_4] : memref<1x128xf32, #tpu.memory_space<vmem>>, vector<1x128xf32>
    %4 = vector.broadcast %3 : vector<1x128xf32> to vector<8x128xf32>
    %5 = arith.addf %2, %4 : vector<8x128xf32>
    %6 = math.tanh %5 : vector<8x128xf32>
    %c0_5 = arith.constant 0 : index
    %c0_6 = arith.constant 0 : index
    %7 = vector.load %arg4[%c0_5, %c0_6] : memref<128x128xf32, #tpu.memory_space<vmem>>, vector<128x128xf32>
    %cst_7 = arith.constant dense<0.000000e+00> : vector<8x128xf32>
    %8 = tpu.matmul %6, %7, %cst_7 {dimension_numbers = #tpu.dot_dimension_numbers<[1], [0], [0], [1], [0, 0, 1, 1], [], []>} : vector<8x128xf32>, vector<128x128xf32>, vector<8x128xf32> -> vector<8x128xf32>
    %c0_8 = arith.constant 0 : index
    %c0_9 = arith.constant 0 : index
    %9 = vector.load %arg5[%c0_8, %c0_9] : memref<1x128xf32, #tpu.memory_space<vmem>>, vector<1x128xf32>
    %10 = vector.broadcast %9 : vector<1x128xf32> to vector<8x128xf32>
    %11 = arith.addf %8, %10 : vector<8x128xf32>
    %cst_10 = arith.constant 0.000000e+00 : f32
    %12 = vector.broadcast %cst_10 : f32 to vector<8x128xf32>
    %13 = arith.cmpf ogt, %11, %12 : vector<8x128xf32>
    %cst_11 = arith.constant 0.00999999977 : f32
    %14 = vector.broadcast %cst_11 : f32 to vector<8x128xf32>
    %15 = arith.mulf %14, %11 : vector<8x128xf32>
    %16 = arith.select %13, %11, %15 : vector<8x128xi1>, vector<8x128xf32>
    %c0_12 = arith.constant 0 : index
    %c0_13 = arith.constant 0 : index
    %17 = vector.load %arg1[%c0_12, %c0_13] : memref<8x128xf32, #tpu.memory_space<vmem>>, vector<8x128xf32>
    %18 = arith.addf %16, %17 : vector<8x128xf32>
    %c0_14 = arith.constant 0 : index
    %c0_15 = arith.constant 0 : index
    %19 = vector.load %arg6[%c0_14, %c0_15] : memref<8x128xf32, #tpu.memory_space<vmem>>, vector<8x128xf32>
    tpu.vector_store %arg6[%c0_14, %c0_15], %18 {strides = array<i32>} : memref<8x128xf32, #tpu.memory_space<vmem>>, vector<8x128xf32>,
    return
  }
  func.func @transform_0(%arg0: i32) -> (i32, i32) {
    %c0_i32 = arith.constant 0 : i32
    %c0_i32_0 = arith.constant 0 : i32
    return %arg0, %c0_i32 : i32, i32
  }
  func.func @transform_1(%arg0: i32) -> (i32, i32) {
    %c0_i32 = arith.constant 0 : i32
    %c0_i32_0 = arith.constant 0 : i32
    %c0_i32_1 = arith.constant 0 : i32
    return %c0_i32, %c0_i32_0 : i32, i32
  }
  func.func @transform_2(%arg0: i32) -> (i32, i32) {
    %c0_i32 = arith.constant 0 : i32
    %c0_i32_0 = arith.constant 0 : i32
    %c0_i32_1 = arith.constant 0 : i32
    return %c0_i32, %c0_i32_0 : i32, i32
  }
  func.func @transform_3(%arg0: i32) -> (i32, i32) {
    %c0_i32 = arith.constant 0 : i32
    %c0_i32_0 = arith.constant 0 : i32
    %c0_i32_1 = arith.constant 0 : i32
    return %c0_i32, %c0_i32_0 : i32, i32
  }
  func.func @transform_4(%arg0: i32) -> (i32, i32) {
    %c0_i32 = arith.constant 0 : i32
    %c0_i32_0 = arith.constant 0 : i32
    %c0_i32_1 = arith.constant 0 : i32
    return %c0_i32, %c0_i32_0 : i32, i32
  }
  func.func @transform_5(%arg0: i32) -> (i32, i32) {
    %c0_i32 = arith.constant 0 : i32
    %c0_i32_0 = arith.constant 0 : i32
    return %arg0, %c0_i32 : i32, i32
  }
}

module attributes {stable_mosaic.version = 11 : i64} {
  func.func @res_kernel(%arg0: i32, %arg1: memref<8x128xf32, #tpu.memory_space<vmem>>, %arg2: memref<128x128xf32, #tpu.memory_space<vmem>>, %arg3: memref<1x128xf32, #tpu.memory_space<vmem>>, %arg4: memref<128x128xf32, #tpu.memory_space<vmem>>, %arg5: memref<1x128xf32, #tpu.memory_space<vmem>>, %arg6: memref<8x128xf32, #tpu.memory_space<vmem>>) attributes {dimension_semantics = [#tpu.dimension_semantics<parallel>], iteration_bounds = array<i64: 1>, scalar_prefetch = 0 : i64, scratch_operands = 0 : i64, tpu.core_type = #tpu.core_type<tc>, window_params = [{transform_indices = @transform_0, window_bounds = array<i64: 8, 128>}, {pipeline_mode = #tpu.pipeline_mode<synchronous>, transform_indices = @transform_1, window_bounds = array<i64: 128, 128>}, {pipeline_mode = #tpu.pipeline_mode<synchronous>, transform_indices = @transform_2, window_bounds = array<i64: 1, 128>}, {pipeline_mode = #tpu.pipeline_mode<synchronous>, transform_indices = @transform_3, window_bounds = array<i64: 128, 128>}, {pipeline_mode = #tpu.pipeline_mode<synchronous>, transform_indices = @transform_4, window_bounds = array<i64: 1, 128>}, {transform_indices = @transform_5, window_bounds = array<i64: 8, 128>}]} {
    %c0 = arith.constant 0 : index
    %c0_0 = arith.constant 0 : index
    %0 = vector.load %arg1[%c0, %c0_0] : memref<8x128xf32, #tpu.memory_space<vmem>>, vector<8x128xf32>
    %c0_1 = arith.constant 0 : index
    %c0_2 = arith.constant 0 : index
    %1 = vector.load %arg2[%c0_1, %c0_2] : memref<128x128xf32, #tpu.memory_space<vmem>>, vector<128x128xf32>
    %cst = arith.constant dense<0.000000e+00> : vector<8x128xf32>
    %2 = tpu.matmul %0, %1, %cst {dimension_numbers = #tpu.dot_dimension_numbers<[1], [0], [0], [1], [0, 0, 1, 1], [], []>} : vector<8x128xf32>, vector<128x128xf32>, vector<8x128xf32> -> vector<8x128xf32>
    %c0_3 = arith.constant 0 : index
    %c0_4 = arith.constant 0 : index
    %3 = vector.load %arg3[%c0_3, %c0_4] : memref<1x128xf32, #tpu.memory_space<vmem>>, vector<1x128xf32>
    %4 = vector.broadcast %3 : vector<1x128xf32> to vector<8x128xf32>
    %5 = arith.addf %2, %4 : vector<8x128xf32>
    %6 = math.tanh %5 : vector<8x128xf32>
    %c0_5 = arith.constant 0 : index
    %c0_6 = arith.constant 0 : index
    %7 = vector.load %arg4[%c0_5, %c0_6] : memref<128x128xf32, #tpu.memory_space<vmem>>, vector<128x128xf32>
    %cst_7 = arith.constant dense<0.000000e+00> : vector<8x128xf32>
    %8 = tpu.matmul %6, %7, %cst_7 {dimension_numbers = #tpu.dot_dimension_numbers<[1], [0], [0], [1], [0, 0, 1, 1], [], []>} : vector<8x128xf32>, vector<128x128xf32>, vector<8x128xf32> -> vector<8x128xf32>
    %c0_8 = arith.constant 0 : index
    %c0_9 = arith.constant 0 : index
    %9 = vector.load %arg5[%c0_8, %c0_9] : memref<1x128xf32, #tpu.memory_space<vmem>>, vector<1x128xf32>
    %10 = vector.broadcast %9 : vector<1x128xf32> to vector<8x128xf32>
    %11 = arith.addf %8, %10 : vector<8x128xf32>
    %cst_10 = arith.constant 0.000000e+00 : f32
    %12 = vector.broadcast %cst_10 : f32 to vector<8x128xf32>
    %13 = arith.cmpf ogt, %11, %12 : vector<8x128xf32>
    %cst_11 = arith.constant 0.00999999977 : f32
    %14 = vector.broadcast %cst_11 : f32 to vector<8x128xf32>
    %15 = arith.mulf %14, %11 : vector<8x128xf32>
    %16 = arith.select %13, %11, %15 : vector<8x128xi1>, vector<8x128xf32>
    %c0_12 = arith.constant 0 : index
    %c0_13 = arith.constant 0 : index
    %17 = vector.load %arg1[%c0_12, %c0_13] : memref<8x128xf32, #tpu.memory_space<vmem>>, vector<8x128xf32>
    %18 = arith.addf %16, %17 : vector<8x128xf32>
    %c0_14 = arith.constant 0 : index
    %c0_15 = arith.constant 0 : index
    %19 = vector.load %arg6[%c0_14, %c0_15] : memref<8x128xf32, #tpu.memory_space<vmem>>, vector<8x128xf32>
    tpu.vector_store %arg6[%c0_14, %c0_15], %18 {strides = array<i32>} : memref<8x128xf32, #tpu.memory_space<vmem>>, vector<8x128xf32>,
    return
  }
  func.func @transform_0(%arg0: i32) -> (i32, i32) {
    %c0_i32 = arith.constant 0 : i32
    %c0_i32_0 = arith.constant 0 : i32
    return %arg0, %c0_i32 : i32, i32
  }
  func.func @transform_1(%arg0: i32) -> (i32, i32) {
    %c0_i32 = arith.constant 0 : i32
    %c0_i32_0 = arith.constant 0 : i32
    %c0_i32_1 = arith.constant 0 : i32
    return %c0_i32, %c0_i32_0 : i32, i32
  }
  func.func @transform_2(%arg0: i32) -> (i32, i32) {
    %c0_i32 = arith.constant 0 : i32
    %c0_i32_0 = arith.constant 0 : i32
    %c0_i32_1 = arith.constant 0 : i32
    return %c0_i32, %c0_i32_0 : i32, i32
  }
  func.func @transform_3(%arg0: i32) -> (i32, i32) {
    %c0_i32 = arith.constant 0 : i32
    %c0_i32_0 = arith.constant 0 : i32
    %c0_i32_1 = arith.constant 0 : i32
    return %c0_i32, %c0_i32_0 : i32, i32
  }
  func.func @transform_4(%arg0: i32) -> (i32, i32) {
    %c0_i32 = arith.constant 0 : i32
    %c0_i32_0 = arith.constant 0 : i32
    %c0_i32_1 = arith.constant 0 : i32
    return %c0_i32, %c0_i32_0 : i32, i32
  }
  func.func @transform_5(%arg0: i32) -> (i32, i32) {
    %c0_i32 = arith.constant 0 : i32
    %c0_i32_0 = arith.constant 0 : i32
    return %arg0, %c0_i32 : i32, i32
  }
}

</mosaic_0001>

<llo_original>
// kernel: tpu_custom_call.1
$region0: #{tpu_custom_call.1}
  #allocation0 [shape = 'u32[]', space=smem, size = 0x4, offset = 0x4, fixed_abs, tag = 'smem constant byte address 0x4 - core index']
  #allocation1 [shape = 'u32[144,128]{1,0:T(1,128)}', space=vmem, size = 0x12000, scoped, tag = 'internal scratch']
  %s0 = inlined_call_operand.hbm [shape: f32[8,128], index: 0, kind: input, shape index: {}]
  %s1 = inlined_call_operand.hbm [shape: f32[128,128], index: 1, kind: input, shape index: {}]
  %s2 = inlined_call_operand.vmem [shape: f32[1,128], index: 2, kind: input, shape index: {}]
  %s3 = inlined_call_operand.hbm [shape: f32[128,128], index: 3, kind: input, shape index: {}]
  %s4 = inlined_call_operand.vmem [shape: f32[1,128], index: 4, kind: input, shape index: {}]
  %s5 = inlined_call_operand.hbm [shape: f32[8,128], index: 5, kind: output, shape index: {}]
  %s6 = sld [smem:[#allocation0]]
  $region42: #{tpu_custom_call.1} parent=0
    _
  %s8 = ssub.s32 1, %s6
  %s9 = scalar_select 0, %s8, %s6
  $region1: #{tpu_custom_call.1} parent=0
    #allocation2 [shape = 'u8[4096]{0}', space=vmem, size = 0x1000, scoped, tag = 'input window, operand 0, single buffered']
    #allocation3 [shape = 's32[1]{0}', space=sflag, size = 0x4, scoped, tag = 'scoped memory for tpu_custom_call.1']
    #allocation4 [shape = 's32[1]{0}', space=sflag, size = 0x4, scoped, tag = 'scoped memory for tpu_custom_call.1']
    #allocation5 [shape = 'u8[65536]{0}', space=vmem, size = 0x10000, scoped, tag = 'input window, operand 1, single buffered']
    #allocation6 [shape = 's32[1]{0}', space=sflag, size = 0x4, scoped, tag = 'scoped memory for tpu_custom_call.1']
    #allocation7 [shape = 'u8[65536]{0}', space=vmem, size = 0x10000, scoped, tag = 'input window, operand 3, single buffered']
    #allocation8 [shape = 'u8[4096]{0}', space=vmem, size = 0x1000, scoped, tag = 'output window, operand 0, single buffered']
    %10 = vsyncpa [#allocation3], 0
    %11 = vsyncpa [#allocation6], 0
    %12 = vsyncpa [#allocation4], 0
    // Predicated region
    $region2: #{tpu_custom_call.1} parent=1 // pred_check
      _
    $region3: #{tpu_custom_call.1} parent=1 // pred_check_branch
      %14 = sbr.rel (0) target = $region5
    $region4: #{tpu_custom_call.1} parent=1 // pred_region
      %s16 = ssub.s32 128, 128
      %17 = vsyncadd [#allocation3], %s16
      %s19 = sshll.u32 [#allocation2], 4
      %s20 = int_to_ptr.vmem [resolvable:$true] %s19
      %22 = dma.hbm_to_vmem [thread:$0]  %s0, 128, %s20, [#allocation3]
    $region5: #{tpu_custom_call.1} parent=1 // pred_fallthru
      _
    // Predicated region
    $region6: #{tpu_custom_call.1} parent=1 // pred_check
      _
    $region7: #{tpu_custom_call.1} parent=1 // pred_check_branch
      %24 = sbr.rel (0) target = $region9
    $region8: #{tpu_custom_call.1} parent=1 // pred_region
      %s26 = ssub.s32 2048, 2048
      %27 = vsyncadd [#allocation6], %s26
      %s28 = sshll.u32 [#allocation5], 4
      %s29 = int_to_ptr.vmem [resolvable:$true] %s28
      %34 = dma.hbm_to_vmem [thread:$0]  %s1, 2048, %s29, [#allocation6], 128, 128, 8
    $region9: #{tpu_custom_call.1} parent=1 // pred_fallthru
      _
    // Predicated region
    $region10: #{tpu_custom_call.1} parent=1 // pred_check
      _
    $region11: #{tpu_custom_call.1} parent=1 // pred_check_branch
      %36 = sbr.rel (0) target = $region13
    $region12: #{tpu_custom_call.1} parent=1 // pred_region
      _
    $region13: #{tpu_custom_call.1} parent=1 // pred_fallthru
      _
    // Predicated region
    $region14: #{tpu_custom_call.1} parent=1 // pred_check
      _
    $region15: #{tpu_custom_call.1} parent=1 // pred_check_branch
      %38 = sbr.rel (0) target = $region17
    $region16: #{tpu_custom_call.1} parent=1 // pred_region
      %s40 = ssub.s32 2048, 2048
      %41 = vsyncadd [#allocation6], %s40
      %s42 = sshll.u32 [#allocation7], 4
      %s43 = int_to_ptr.vmem [resolvable:$true] %s42
      %48 = dma.hbm_to_vmem [thread:$0]  %s3, 2048, %s43, [#allocation6], 128, 128, 8
    $region17: #{tpu_custom_call.1} parent=1 // pred_fallthru
      _
    // Predicated region
    $region18: #{tpu_custom_call.1} parent=1 // pred_check
      _
    $region19: #{tpu_custom_call.1} parent=1 // pred_check_branch
      %50 = sbr.rel (0) target = $region21
    $region20: #{tpu_custom_call.1} parent=1 // pred_region
      _
    $region21: #{tpu_custom_call.1} parent=1 // pred_fallthru
      _
    // Predicated region
    $region22: #{tpu_custom_call.1} parent=1 // pred_check
      _
    $region23: #{tpu_custom_call.1} parent=1 // pred_check_branch
      %52 = sbr.rel (0) target = $region25
    $region24: #{tpu_custom_call.1} parent=1 // pred_region
      %53 = dma.done [#allocation3], 128
    $region25: #{tpu_custom_call.1} parent=1 // pred_fallthru
      _
    // Predicated region
    $region26: #{tpu_custom_call.1} parent=1 // pred_check
      _
    $region27: #{tpu_custom_call.1} parent=1 // pred_check_branch
      %55 = sbr.rel (0) target = $region29
    $region28: #{tpu_custom_call.1} parent=1 // pred_region
      %56 = dma.done [#allocation6], 2048
    $region29: #{tpu_custom_call.1} parent=1 // pred_fallthru
      _
    // Predicated region
    $region30: #{tpu_custom_call.1} parent=1 // pred_check
      _
    $region31: #{tpu_custom_call.1} parent=1 // pred_check_branch
      %58 = sbr.rel (0) target = $region33
    $region32: #{tpu_custom_call.1} parent=1 // pred_region
      %59 = dma.done [#allocation6], 2048
    $region33: #{tpu_custom_call.1} parent=1 // pred_fallthru
      _
    %v60 = vld [vmem:[#allocation2] sm:$0xff]
    %v61 = vld [vmem:[#allocation5] sm:$0xff]
    %v62 = vld [vmem:[#allocation5 + $0x8] sm:$0xff]
    %v63 = vld [vmem:[#allocation5 + $0x10] sm:$0xff]
    %v64 = vld [vmem:[#allocation5 + $0x18] sm:$0xff]
    %v65 = vld [vmem:[#allocation5 + $0x20] sm:$0xff]
    %v66 = vld [vmem:[#allocation5 + $0x28] sm:$0xff]
    %v67 = vld [vmem:[#allocation5 + $0x30] sm:$0xff]
    %v68 = vld [vmem:[#allocation5 + $0x38] sm:$0xff]
    %v69 = vld [vmem:[#allocation5 + $0x40] sm:$0xff]
    %v70 = vld [vmem:[#allocation5 + $0x48] sm:$0xff]
    %v71 = vld [vmem:[#allocation5 + $0x50] sm:$0xff]
    %v72 = vld [vmem:[#allocation5 + $0x58] sm:$0xff]
    %v73 = vld [vmem:[#allocation5 + $0x60] sm:$0xff]
    %v74 = vld [vmem:[#allocation5 + $0x68] sm:$0xff]
    %v75 = vld [vmem:[#allocation5 + $0x70] sm:$0xff]
    %v76 = vld [vmem:[#allocation5 + $0x78] sm:$0xff]
    %v77 = vld [vmem:[%s2] sm:$0x1]
    %v79 = vlaneseq
    %v80 = vshrl.u32 %v79, 7
    %v81 = vsub.s32 0, %v80
    %v82 = vrot.slane %v77, %v81
    %84 = vmatprep.subr.mxu0 0.0
    %85 = vmatpush1.msra.mxu0 %v61
    %86 = vmatprep.subr.mxu0 0.0
    %87 = vmatpush1.msra.mxu0 %v62
    %88 = vmatprep.subr.mxu0 0.0
    %89 = vmatpush1.msra.mxu0 %v63
    %90 = vmatprep.subr.mxu0 0.0
    %91 = vmatpush1.msra.mxu0 %v64
    %92 = vmatprep.subr.mxu0 0.0
    %93 = vmatpush1.msra.mxu0 %v65
    %94 = vmatprep.subr.mxu0 0.0
    %95 = vmatpush1.msra.mxu0 %v66
    %96 = vmatprep.subr.mxu0 0.0
    %97 = vmatpush1.msra.mxu0 %v67
    %98 = vmatprep.subr.mxu0 0.0
    %99 = vmatpush1.msra.mxu0 %v68
    %100 = vmatprep.subr.mxu0 0.0
    %101 = vmatpush1.msra.mxu0 %v69
    %102 = vmatprep.subr.mxu0 0.0
    %103 = vmatpush1.msra.mxu0 %v70
    %104 = vmatprep.subr.mxu0 0.0
    %105 = vmatpush1.msra.mxu0 %v71
    %106 = vmatprep.subr.mxu0 0.0
    %107 = vmatpush1.msra.mxu0 %v72
    %108 = vmatprep.subr.mxu0 0.0
    %109 = vmatpush1.msra.mxu0 %v73
    %110 = vmatprep.subr.mxu0 0.0
    %111 = vmatpush1.msra.mxu0 %v74
    %112 = vmatprep.subr.mxu0 0.0
    %113 = vmatpush1.msra.mxu0 %v75
    %114 = vmatprep.subr.mxu0 0.0
    %115 = vmatpush1.msra.mxu0 %v76
    %116 = vmatprep.subr.mxu0 0.0
    %117 = vmatpush1.msra.mxu0 0.0
    %118 = vmatprep.subr.mxu0 0.0
    %119 = vmatpush1.msra.mxu0 0.0
    %120 = vmatprep.subr.mxu0 0.0
    %121 = vmatpush1.msra.mxu0 0.0
    %122 = vmatprep.subr.mxu0 0.0
    %123 = vmatpush1.msra.mxu0 0.0
    %124 = vmatprep.subr.mxu0 0.0
    %125 = vmatpush1.msra.mxu0 0.0
    %126 = vmatprep.subr.mxu0 0.0
    %127 = vmatpush1.msra.mxu0 0.0
    %128 = vmatprep.subr.mxu0 0.0
    %129 = vmatpush1.msra.mxu0 0.0
    %130 = vmatprep.subr.mxu0 0.0
    %131 = vmatpush1.msra.mxu0 0.0
    %132 = vmatprep.subr.mxu0 0.0
    %133 = vmatpush1.msra.mxu0 0.0
    %134 = vmatprep.subr.mxu0 0.0
    %135 = vmatpush1.msra.mxu0 0.0
    %136 = vmatprep.subr.mxu0 0.0
    %137 = vmatpush1.msra.mxu0 0.0
    %138 = vmatprep.subr.mxu0 0.0
    %139 = vmatpush1.msra.mxu0 0.0
    %140 = vmatprep.subr.mxu0 0.0
    %141 = vmatpush1.msra.mxu0 0.0
    %142 = vmatprep.subr.mxu0 0.0
    %143 = vmatpush1.msra.mxu0 0.0
    %144 = vmatprep.subr.mxu0 0.0
    %145 = vmatpush1.msra.mxu0 0.0
    %146 = vmatprep.subr.mxu0 0.0
    %147 = vmatpush1.msra.mxu0 0.0
    %148 = vmatprep.mubr.f32.mxu0 0.0
    %149 = vmatmul.mubr.f32.gmra.mrb[0].mxu0 %v60
    %v150 = vpop.f32.mrb[0].mxu0
    %v151 = vadd.f32 %v82, %v150
    %v152 = vpop.f32.mrb[0].mxu0
    %153 = vdwg.mxu0
    %v154 = vtanh.pop %v151
    %v155 = vld [vmem:[#allocation7] sm:$0xff]
    %v156 = vld [vmem:[#allocation7 + $0x8] sm:$0xff]
    %v157 = vld [vmem:[#allocation7 + $0x10] sm:$0xff]
    %v158 = vld [vmem:[#allocation7 + $0x18] sm:$0xff]
    %v159 = vld [vmem:[#allocation7 + $0x20] sm:$0xff]
    %v160 = vld [vmem:[#allocation7 + $0x28] sm:$0xff]
    %v161 = vld [vmem:[#allocation7 + $0x30] sm:$0xff]
    %v162 = vld [vmem:[#allocation7 + $0x38] sm:$0xff]
    %v163 = vld [vmem:[#allocation7 + $0x40] sm:$0xff]
    %v164 = vld [vmem:[#allocation7 + $0x48] sm:$0xff]
    %v165 = vld [vmem:[#allocation7 + $0x50] sm:$0xff]
    %v166 = vld [vmem:[#allocation7 + $0x58] sm:$0xff]
    %v167 = vld [vmem:[#allocation7 + $0x60] sm:$0xff]
    %v168 = vld [vmem:[#allocation7 + $0x68] sm:$0xff]
    %v169 = vld [vmem:[#allocation7 + $0x70] sm:$0xff]
    %v170 = vld [vmem:[#allocation7 + $0x78] sm:$0xff]
    %v171 = vld [vmem:[%s4] sm:$0x1]
    %v173 = vlaneseq
    %v174 = vshrl.u32 %v173, 7
    %v175 = vsub.s32 0, %v174
    %v176 = vrot.slane %v171, %v175
    %178 = vmatprep.subr.mxu0 0.0
    %179 = vmatpush1.msra.mxu0 %v155
    %180 = vmatprep.subr.mxu0 0.0
    %181 = vmatpush1.msra.mxu0 %v156
    %182 = vmatprep.subr.mxu0 0.0
    %183 = vmatpush1.msra.mxu0 %v157
    %184 = vmatprep.subr.mxu0 0.0
    %185 = vmatpush1.msra.mxu0 %v158
    %186 = vmatprep.subr.mxu0 0.0
    %187 = vmatpush1.msra.mxu0 %v159
    %188 = vmatprep.subr.mxu0 0.0
    %189 = vmatpush1.msra.mxu0 %v160
    %190 = vmatprep.subr.mxu0 0.0
    %191 = vmatpush1.msra.mxu0 %v161
    %192 = vmatprep.subr.mxu0 0.0
    %193 = vmatpush1.msra.mxu0 %v162
    %194 = vmatprep.subr.mxu0 0.0
    %195 = vmatpush1.msra.mxu0 %v163
    %196 = vmatprep.subr.mxu0 0.0
    %197 = vmatpush1.msra.mxu0 %v164
    %198 = vmatprep.subr.mxu0 0.0
    %199 = vmatpush1.msra.mxu0 %v165
    %200 = vmatprep.subr.mxu0 0.0
    %201 = vmatpush1.msra.mxu0 %v166
    %202 = vmatprep.subr.mxu0 0.0
    %203 = vmatpush1.msra.mxu0 %v167
    %204 = vmatprep.subr.mxu0 0.0
    %205 = vmatpush1.msra.mxu0 %v168
    %206 = vmatprep.subr.mxu0 0.0
    %207 = vmatpush1.msra.mxu0 %v169
    %208 = vmatprep.subr.mxu0 0.0
    %209 = vmatpush1.msra.mxu0 %v170
    %210 = vmatprep.subr.mxu0 0.0
    %211 = vmatpush1.msra.mxu0 0.0
    %212 = vmatprep.subr.mxu0 0.0
    %213 = vmatpush1.msra.mxu0 0.0
    %214 = vmatprep.subr.mxu0 0.0
    %215 = vmatpush1.msra.mxu0 0.0
    %216 = vmatprep.subr.mxu0 0.0
    %217 = vmatpush1.msra.mxu0 0.0
    %218 = vmatprep.subr.mxu0 0.0
    %219 = vmatpush1.msra.mxu0 0.0
    %220 = vmatprep.subr.mxu0 0.0
    %221 = vmatpush1.msra.mxu0 0.0
    %222 = vmatprep.subr.mxu0 0.0
    %223 = vmatpush1.msra.mxu0 0.0
    %224 = vmatprep.subr.mxu0 0.0
    %225 = vmatpush1.msra.mxu0 0.0
    %226 = vmatprep.subr.mxu0 0.0
    %227 = vmatpush1.msra.mxu0 0.0
    %228 = vmatprep.subr.mxu0 0.0
    %229 = vmatpush1.msra.mxu0 0.0
    %230 = vmatprep.subr.mxu0 0.0
    %231 = vmatpush1.msra.mxu0 0.0
    %232 = vmatprep.subr.mxu0 0.0
    %233 = vmatpush1.msra.mxu0 0.0
    %234 = vmatprep.subr.mxu0 0.0
    %235 = vmatpush1.msra.mxu0 0.0
    %236 = vmatprep.subr.mxu0 0.0
    %237 = vmatpush1.msra.mxu0 0.0
    %238 = vmatprep.subr.mxu0 0.0
    %239 = vmatpush1.msra.mxu0 0.0
    %240 = vmatprep.subr.mxu0 0.0
    %241 = vmatpush1.msra.mxu0 0.0
    %242 = vmatprep.mubr.f32.mxu0 0.0
    %243 = vmatmul.mubr.f32.gmra.mrb[0].mxu0 %v154
    %v244 = vpop.f32.mrb[0].mxu0
    %v245 = vadd.f32 %v176, %v244
    %v246 = vpop.f32.mrb[0].mxu0
    %247 = vdwg.mxu0
    %vm248 = vcmp.gt.f32.partialorder %v245, 0.0
    %v249 = vmul.f32 %v245, 0.01
    %v250 = vsel %vm248, %v245, %v249
    %v251 = vadd.f32 %v250, %v60
    %252 = vst [vmem:[#allocation8] sm:$0xff] %v251
    // Predicated region
    $region34: #{tpu_custom_call.1} parent=1 // pred_check
      _
    $region35: #{tpu_custom_call.1} parent=1 // pred_check_branch
      %254 = sbr.rel (0) target = $region37
    $region36: #{tpu_custom_call.1} parent=1 // pred_region
      %s256 = ssub.s32 128, 128
      %257 = vsyncadd [#allocation4], %s256
      %s259 = sshll.u32 [#allocation8], 4
      %s260 = int_to_ptr.vmem [resolvable:$true] %s259
      %262 = dma.vmem_to_hbm [thread:$0]  %s260, 128, %s5, [#allocation4]
    $region37: #{tpu_custom_call.1} parent=1 // pred_fallthru
      _
    // Predicated region
    $region38: #{tpu_custom_call.1} parent=1 // pred_check
      _
    $region39: #{tpu_custom_call.1} parent=1 // pred_check_branch
      %264 = sbr.rel (0) target = $region41
    $region40: #{tpu_custom_call.1} parent=1 // pred_region
      %265 = dma.done [#allocation4], 128
    $region41: #{tpu_custom_call.1} parent=1 // pred_fallthru
      _
    %266 = vsyncpa [#allocation3], 1
    %267 = vsyncpa [#allocation6], 1
    %268 = vsyncpa [#allocation4], 1

// kernel: tpu_custom_call.1
$region0: #{tpu_custom_call.1}
  #allocation0 [shape = 'u32[]', space=smem, size = 0x4, offset = 0x4, fixed_abs, tag = 'smem constant byte address 0x4 - core index']
  #allocation1 [shape = 'u32[144,128]{1,0:T(1,128)}', space=vmem, size = 0x12000, scoped, tag = 'internal scratch']
  %s0 = inlined_call_operand.hbm [shape: f32[8,128], index: 0, kind: input, shape index: {}]
  %s1 = inlined_call_operand.hbm [shape: f32[128,128], index: 1, kind: input, shape index: {}]
  %s2 = inlined_call_operand.vmem [shape: f32[1,128], index: 2, kind: input, shape index: {}]
  %s3 = inlined_call_operand.hbm [shape: f32[128,128], index: 3, kind: input, shape index: {}]
  %s4 = inlined_call_operand.vmem [shape: f32[1,128], index: 4, kind: input, shape index: {}]
  %s5 = inlined_call_operand.hbm [shape: f32[8,128], index: 5, kind: output, shape index: {}]
  %s6 = sld [smem:[#allocation0]]
  $region42: #{tpu_custom_call.1} parent=0
    _
  %s8 = ssub.s32 1, %s6
  %s9 = scalar_select 0, %s8, %s6
  $region1: #{tpu_custom_call.1} parent=0
    #allocation2 [shape = 'u8[4096]{0}', space=vmem, size = 0x1000, scoped, tag = 'input window, operand 0, single buffered']
    #allocation3 [shape = 's32[1]{0}', space=sflag, size = 0x4, scoped, tag = 'scoped memory for tpu_custom_call.1']
    #allocation4 [shape = 's32[1]{0}', space=sflag, size = 0x4, scoped, tag = 'scoped memory for tpu_custom_call.1']
    #allocation5 [shape = 'u8[65536]{0}', space=vmem, size = 0x10000, scoped, tag = 'input window, operand 1, single buffered']
    #allocation6 [shape = 's32[1]{0}', space=sflag, size = 0x4, scoped, tag = 'scoped memory for tpu_custom_call.1']
    #allocation7 [shape = 'u8[65536]{0}', space=vmem, size = 0x10000, scoped, tag = 'input window, operand 3, single buffered']
    #allocation8 [shape = 'u8[4096]{0}', space=vmem, size = 0x1000, scoped, tag = 'output window, operand 0, single buffered']
    %10 = vsyncpa [#allocation3], 0
    %11 = vsyncpa [#allocation6], 0
    %12 = vsyncpa [#allocation4], 0
    // Predicated region
    $region2: #{tpu_custom_call.1} parent=1 // pred_check
      _
    $region3: #{tpu_custom_call.1} parent=1 // pred_check_branch
      %14 = sbr.rel (0) target = $region5
    $region4: #{tpu_custom_call.1} parent=1 // pred_region
      %s16 = ssub.s32 128, 128
      %17 = vsyncadd [#allocation3], %s16
      %s19 = sshll.u32 [#allocation2], 4
      %s20 = int_to_ptr.vmem [resolvable:$true] %s19
      %22 = dma.hbm_to_vmem [thread:$0]  %s0, 128, %s20, [#allocation3]
    $region5: #{tpu_custom_call.1} parent=1 // pred_fallthru
      _
    // Predicated region
    $region6: #{tpu_custom_call.1} parent=1 // pred_check
      _
    $region7: #{tpu_custom_call.1} parent=1 // pred_check_branch
      %24 = sbr.rel (0) target = $region9
    $region8: #{tpu_custom_call.1} parent=1 // pred_region
      %s26 = ssub.s32 2048, 2048
      %27 = vsyncadd [#allocation6], %s26
      %s28 = sshll.u32 [#allocation5], 4
      %s29 = int_to_ptr.vmem [resolvable:$true] %s28
      %34 = dma.hbm_to_vmem [thread:$0]  %s1, 2048, %s29, [#allocation6], 128, 128, 8
    $region9: #{tpu_custom_call.1} parent=1 // pred_fallthru
      _
    // Predicated region
    $region10: #{tpu_custom_call.1} parent=1 // pred_check
      _
    $region11: #{tpu_custom_call.1} parent=1 // pred_check_branch
      %36 = sbr.rel (0) target = $region13
    $region12: #{tpu_custom_call.1} parent=1 // pred_region
      _
    $region13: #{tpu_custom_call.1} parent=1 // pred_fallthru
      _
    // Predicated region
    $region14: #{tpu_custom_call.1} parent=1 // pred_check
      _
    $region15: #{tpu_custom_call.1} parent=1 // pred_check_branch
      %38 = sbr.rel (0) target = $region17
    $region16: #{tpu_custom_call.1} parent=1 // pred_region
      %s40 = ssub.s32 2048, 2048
      %41 = vsyncadd [#allocation6], %s40
      %s42 = sshll.u32 [#allocation7], 4
      %s43 = int_to_ptr.vmem [resolvable:$true] %s42
      %48 = dma.hbm_to_vmem [thread:$0]  %s3, 2048, %s43, [#allocation6], 128, 128, 8
    $region17: #{tpu_custom_call.1} parent=1 // pred_fallthru
      _
    // Predicated region
    $region18: #{tpu_custom_call.1} parent=1 // pred_check
      _
    $region19: #{tpu_custom_call.1} parent=1 // pred_check_branch
      %50 = sbr.rel (0) target = $region21
    $region20: #{tpu_custom_call.1} parent=1 // pred_region
      _
    $region21: #{tpu_custom_call.1} parent=1 // pred_fallthru
      _
    // Predicated region
    $region22: #{tpu_custom_call.1} parent=1 // pred_check
      _
    $region23: #{tpu_custom_call.1} parent=1 // pred_check_branch
      %52 = sbr.rel (0) target = $region25
    $region24: #{tpu_custom_call.1} parent=1 // pred_region
      %53 = dma.done [#allocation3], 128
    $region25: #{tpu_custom_call.1} parent=1 // pred_fallthru
      _
    // Predicated region
    $region26: #{tpu_custom_call.1} parent=1 // pred_check
      _
    $region27: #{tpu_custom_call.1} parent=1 // pred_check_branch
      %55 = sbr.rel (0) target = $region29
    $region28: #{tpu_custom_call.1} parent=1 // pred_region
      %56 = dma.done [#allocation6], 2048
    $region29: #{tpu_custom_call.1} parent=1 // pred_fallthru
      _
    // Predicated region
    $region30: #{tpu_custom_call.1} parent=1 // pred_check
      _
    $region31: #{tpu_custom_call.1} parent=1 // pred_check_branch
      %58 = sbr.rel (0) target = $region33
    $region32: #{tpu_custom_call.1} parent=1 // pred_region
      %59 = dma.done [#allocation6], 2048
    $region33: #{tpu_custom_call.1} parent=1 // pred_fallthru
      _
    %v60 = vld [vmem:[#allocation2] sm:$0xff]
    %v61 = vld [vmem:[#allocation5] sm:$0xff]
    %v62 = vld [vmem:[#allocation5 + $0x8] sm:$0xff]
    %v63 = vld [vmem:[#allocation5 + $0x10] sm:$0xff]
    %v64 = vld [vmem:[#allocation5 + $0x18] sm:$0xff]
    %v65 = vld [vmem:[#allocation5 + $0x20] sm:$0xff]
    %v66 = vld [vmem:[#allocation5 + $0x28] sm:$0xff]
    %v67 = vld [vmem:[#allocation5 + $0x30] sm:$0xff]
    %v68 = vld [vmem:[#allocation5 + $0x38] sm:$0xff]
    %v69 = vld [vmem:[#allocation5 + $0x40] sm:$0xff]
    %v70 = vld [vmem:[#allocation5 + $0x48] sm:$0xff]
    %v71 = vld [vmem:[#allocation5 + $0x50] sm:$0xff]
    %v72 = vld [vmem:[#allocation5 + $0x58] sm:$0xff]
    %v73 = vld [vmem:[#allocation5 + $0x60] sm:$0xff]
    %v74 = vld [vmem:[#allocation5 + $0x68] sm:$0xff]
    %v75 = vld [vmem:[#allocation5 + $0x70] sm:$0xff]
    %v76 = vld [vmem:[#allocation5 + $0x78] sm:$0xff]
    %v77 = vld [vmem:[%s2] sm:$0x1]
    %v79 = vlaneseq
    %v80 = vshrl.u32 %v79, 7
    %v81 = vsub.s32 0, %v80
    %v82 = vrot.slane %v77, %v81
    %84 = vmatprep.subr.mxu0 0.0
    %85 = vmatpush1.msra.mxu0 %v61
    %86 = vmatprep.subr.mxu0 0.0
    %87 = vmatpush1.msra.mxu0 %v62
    %88 = vmatprep.subr.mxu0 0.0
    %89 = vmatpush1.msra.mxu0 %v63
    %90 = vmatprep.subr.mxu0 0.0
    %91 = vmatpush1.msra.mxu0 %v64
    %92 = vmatprep.subr.mxu0 0.0
    %93 = vmatpush1.msra.mxu0 %v65
    %94 = vmatprep.subr.mxu0 0.0
    %95 = vmatpush1.msra.mxu0 %v66
    %96 = vmatprep.subr.mxu0 0.0
    %97 = vmatpush1.msra.mxu0 %v67
    %98 = vmatprep.subr.mxu0 0.0
    %99 = vmatpush1.msra.mxu0 %v68
    %100 = vmatprep.subr.mxu0 0.0
    %101 = vmatpush1.msra.mxu0 %v69
    %102 = vmatprep.subr.mxu0 0.0
    %103 = vmatpush1.msra.mxu0 %v70
    %104 = vmatprep.subr.mxu0 0.0
    %105 = vmatpush1.msra.mxu0 %v71
    %106 = vmatprep.subr.mxu0 0.0
    %107 = vmatpush1.msra.mxu0 %v72
    %108 = vmatprep.subr.mxu0 0.0
    %109 = vmatpush1.msra.mxu0 %v73
    %110 = vmatprep.subr.mxu0 0.0
    %111 = vmatpush1.msra.mxu0 %v74
    %112 = vmatprep.subr.mxu0 0.0
    %113 = vmatpush1.msra.mxu0 %v75
    %114 = vmatprep.subr.mxu0 0.0
    %115 = vmatpush1.msra.mxu0 %v76
    %116 = vmatprep.subr.mxu0 0.0
    %117 = vmatpush1.msra.mxu0 0.0
    %118 = vmatprep.subr.mxu0 0.0
    %119 = vmatpush1.msra.mxu0 0.0
    %120 = vmatprep.subr.mxu0 0.0
    %121 = vmatpush1.msra.mxu0 0.0
    %122 = vmatprep.subr.mxu0 0.0
    %123 = vmatpush1.msra.mxu0 0.0
    %124 = vmatprep.subr.mxu0 0.0
    %125 = vmatpush1.msra.mxu0 0.0
    %126 = vmatprep.subr.mxu0 0.0
    %127 = vmatpush1.msra.mxu0 0.0
    %128 = vmatprep.subr.mxu0 0.0
    %129 = vmatpush1.msra.mxu0 0.0
    %130 = vmatprep.subr.mxu0 0.0
    %131 = vmatpush1.msra.mxu0 0.0
    %132 = vmatprep.subr.mxu0 0.0
    %133 = vmatpush1.msra.mxu0 0.0
    %134 = vmatprep.subr.mxu0 0.0
    %135 = vmatpush1.msra.mxu0 0.0
    %136 = vmatprep.subr.mxu0 0.0
    %137 = vmatpush1.msra.mxu0 0.0
    %138 = vmatprep.subr.mxu0 0.0
    %139 = vmatpush1.msra.mxu0 0.0
    %140 = vmatprep.subr.mxu0 0.0
    %141 = vmatpush1.msra.mxu0 0.0
    %142 = vmatprep.subr.mxu0 0.0
    %143 = vmatpush1.msra.mxu0 0.0
    %144 = vmatprep.subr.mxu0 0.0
    %145 = vmatpush1.msra.mxu0 0.0
    %146 = vmatprep.subr.mxu0 0.0
    %147 = vmatpush1.msra.mxu0 0.0
    %148 = vmatprep.mubr.f32.mxu0 0.0
    %149 = vmatmul.mubr.f32.gmra.mrb[0].mxu0 %v60
    %v150 = vpop.f32.mrb[0].mxu0
    %v151 = vadd.f32 %v82, %v150
    %v152 = vpop.f32.mrb[0].mxu0
    %153 = vdwg.mxu0
    %v154 = vtanh.pop %v151
    %v155 = vld [vmem:[#allocation7] sm:$0xff]
    %v156 = vld [vmem:[#allocation7 + $0x8] sm:$0xff]
    %v157 = vld [vmem:[#allocation7 + $0x10] sm:$0xff]
    %v158 = vld [vmem:[#allocation7 + $0x18] sm:$0xff]
    %v159 = vld [vmem:[#allocation7 + $0x20] sm:$0xff]
    %v160 = vld [vmem:[#allocation7 + $0x28] sm:$0xff]
    %v161 = vld [vmem:[#allocation7 + $0x30] sm:$0xff]
    %v162 = vld [vmem:[#allocation7 + $0x38] sm:$0xff]
    %v163 = vld [vmem:[#allocation7 + $0x40] sm:$0xff]
    %v164 = vld [vmem:[#allocation7 + $0x48] sm:$0xff]
    %v165 = vld [vmem:[#allocation7 + $0x50] sm:$0xff]
    %v166 = vld [vmem:[#allocation7 + $0x58] sm:$0xff]
    %v167 = vld [vmem:[#allocation7 + $0x60] sm:$0xff]
    %v168 = vld [vmem:[#allocation7 + $0x68] sm:$0xff]
    %v169 = vld [vmem:[#allocation7 + $0x70] sm:$0xff]
    %v170 = vld [vmem:[#allocation7 + $0x78] sm:$0xff]
    %v171 = vld [vmem:[%s4] sm:$0x1]
    %v173 = vlaneseq
    %v174 = vshrl.u32 %v173, 7
    %v175 = vsub.s32 0, %v174
    %v176 = vrot.slane %v171, %v175
    %178 = vmatprep.subr.mxu0 0.0
    %179 = vmatpush1.msra.mxu0 %v155
    %180 = vmatprep.subr.mxu0 0.0
    %181 = vmatpush1.msra.mxu0 %v156
    %182 = vmatprep.subr.mxu0 0.0
    %183 = vmatpush1.msra.mxu0 %v157
    %184 = vmatprep.subr.mxu0 0.0
    %185 = vmatpush1.msra.mxu0 %v158
    %186 = vmatprep.subr.mxu0 0.0
    %187 = vmatpush1.msra.mxu0 %v159
    %188 = vmatprep.subr.mxu0 0.0
    %189 = vmatpush1.msra.mxu0 %v160
    %190 = vmatprep.subr.mxu0 0.0
    %191 = vmatpush1.msra.mxu0 %v161
    %192 = vmatprep.subr.mxu0 0.0
    %193 = vmatpush1.msra.mxu0 %v162
    %194 = vmatprep.subr.mxu0 0.0
    %195 = vmatpush1.msra.mxu0 %v163
    %196 = vmatprep.subr.mxu0 0.0
    %197 = vmatpush1.msra.mxu0 %v164
    %198 = vmatprep.subr.mxu0 0.0
    %199 = vmatpush1.msra.mxu0 %v165
    %200 = vmatprep.subr.mxu0 0.0
    %201 = vmatpush1.msra.mxu0 %v166
    %202 = vmatprep.subr.mxu0 0.0
    %203 = vmatpush1.msra.mxu0 %v167
    %204 = vmatprep.subr.mxu0 0.0
    %205 = vmatpush1.msra.mxu0 %v168
    %206 = vmatprep.subr.mxu0 0.0
    %207 = vmatpush1.msra.mxu0 %v169
    %208 = vmatprep.subr.mxu0 0.0
    %209 = vmatpush1.msra.mxu0 %v170
    %210 = vmatprep.subr.mxu0 0.0
    %211 = vmatpush1.msra.mxu0 0.0
    %212 = vmatprep.subr.mxu0 0.0
    %213 = vmatpush1.msra.mxu0 0.0
    %214 = vmatprep.subr.mxu0 0.0
    %215 = vmatpush1.msra.mxu0 0.0
    %216 = vmatprep.subr.mxu0 0.0
    %217 = vmatpush1.msra.mxu0 0.0
    %218 = vmatprep.subr.mxu0 0.0
    %219 = vmatpush1.msra.mxu0 0.0
    %220 = vmatprep.subr.mxu0 0.0
    %221 = vmatpush1.msra.mxu0 0.0
    %222 = vmatprep.subr.mxu0 0.0
    %223 = vmatpush1.msra.mxu0 0.0
    %224 = vmatprep.subr.mxu0 0.0
    %225 = vmatpush1.msra.mxu0 0.0
    %226 = vmatprep.subr.mxu0 0.0
    %227 = vmatpush1.msra.mxu0 0.0
    %228 = vmatprep.subr.mxu0 0.0
    %229 = vmatpush1.msra.mxu0 0.0
    %230 = vmatprep.subr.mxu0 0.0
    %231 = vmatpush1.msra.mxu0 0.0
    %232 = vmatprep.subr.mxu0 0.0
    %233 = vmatpush1.msra.mxu0 0.0
    %234 = vmatprep.subr.mxu0 0.0
    %235 = vmatpush1.msra.mxu0 0.0
    %236 = vmatprep.subr.mxu0 0.0
    %237 = vmatpush1.msra.mxu0 0.0
    %238 = vmatprep.subr.mxu0 0.0
    %239 = vmatpush1.msra.mxu0 0.0
    %240 = vmatprep.subr.mxu0 0.0
    %241 = vmatpush1.msra.mxu0 0.0
    %242 = vmatprep.mubr.f32.mxu0 0.0
    %243 = vmatmul.mubr.f32.gmra.mrb[0].mxu0 %v154
    %v244 = vpop.f32.mrb[0].mxu0
    %v245 = vadd.f32 %v176, %v244
    %v246 = vpop.f32.mrb[0].mxu0
    %247 = vdwg.mxu0
    %vm248 = vcmp.gt.f32.partialorder %v245, 0.0
    %v249 = vmul.f32 %v245, 0.01
    %v250 = vsel %vm248, %v245, %v249
    %v251 = vadd.f32 %v250, %v60
    %252 = vst [vmem:[#allocation8] sm:$0xff] %v251
    // Predicated region
    $region34: #{tpu_custom_call.1} parent=1 // pred_check
      _
    $region35: #{tpu_custom_call.1} parent=1 // pred_check_branch
      %254 = sbr.rel (0) target = $region37
    $region36: #{tpu_custom_call.1} parent=1 // pred_region
      %s256 = ssub.s32 128, 128
      %257 = vsyncadd [#allocation4], %s256
      %s259 = sshll.u32 [#allocation8], 4
      %s260 = int_to_ptr.vmem [resolvable:$true] %s259
      %262 = dma.vmem_to_hbm [thread:$0]  %s260, 128, %s5, [#allocation4]
    $region37: #{tpu_custom_call.1} parent=1 // pred_fallthru
      _
    // Predicated region
    $region38: #{tpu_custom_call.1} parent=1 // pred_check
      _
    $region39: #{tpu_custom_call.1} parent=1 // pred_check_branch
      %264 = sbr.rel (0) target = $region41
    $region40: #{tpu_custom_call.1} parent=1 // pred_region
      %265 = dma.done [#allocation4], 128
    $region41: #{tpu_custom_call.1} parent=1 // pred_fallthru
      _
    %266 = vsyncpa [#allocation3], 1
    %267 = vsyncpa [#allocation6], 1
    %268 = vsyncpa [#allocation4], 1

</llo_original>
